<compile_context>
chip_gen: v6e
topology: v6e:2x2x1
jax: 0.10.0
libtpu: 0.0.40
codegen_flags: <defaults>
</compile_context>

<pallas_src>
import functools

import jax
import jax.numpy as jnp
from jax.experimental import pallas as pl
from jax.experimental.pallas import tpu as pltpu

# ----- model dims (small, consistent with the module's __init__) -----
VOCAB_SIZE = 64
EMBED_DIM = 32
HIDDEN_DIM = 32

_LANE = 128
_SUBLANE = 8


def _round_up(x, m):
    return (x + m - 1) // m * m


# =====================================================================
# Kernel: one grid step == one LSTM time step (h/c carried in scratch)
# =====================================================================
def _lstm_seq_kernel(tok_ref,     # scalar prefetch (SMEM): (T,) int32 token ids
                     emb_ref,     # (V, E)  f32  embedding table, resident in VMEM
                     packed_ref,  # (R, L)  bf16 packed weights + biases, resident
                     out_ref,     # (1, 1, Vp) f32  this step's logits row
                     h_sc,        # (1, H) f32 scratch: hidden state
                     c_sc,        # (1, H) f32 scratch: cell state
                     *, E, H, bg_row, bf_row):
    t = pl.program_id(0)
    H4 = 4 * H
    Vp = out_ref.shape[-1]

    # Zero initial state (PyTorch default h0 = c0 = 0).
    @pl.when(t == 0)
    def _():
        h_sc[...] = jnp.zeros_like(h_sc)
        c_sc[...] = jnp.zeros_like(c_sc)

    # --- embedding lookup: in-kernel dynamic row select (no per-token DMA) ---
    tok = tok_ref[t]
    x = emb_ref[pl.ds(tok, 1), :].astype(jnp.bfloat16)                  # (1, E)

    # --- static views into the single packed constant block (free slices) ---
    w_ih_t = packed_ref[0:E, 0:H4]                    # (E, 4H) bf16, g cols pre-scaled by 2
    w_hh_t = packed_ref[E:E + H, 0:H4]                # (H, 4H) bf16, g cols pre-scaled by 2
    w_fc_t = packed_ref[E + H:E + 2 * H, 0:Vp]        # (H, Vp) bf16, cols >= V are zero
    b_g = packed_ref[bg_row:bg_row + 1, 0:H4].astype(jnp.float32)   # (1, 4H)
    b_o = packed_ref[bf_row:bf_row + 1, 0:Vp].astype(jnp.float32)   # (1, Vp), lanes >= V zero

    # --- gates = x @ W_ih^T + h_prev @ W_hh^T + (b_ih + b_hh) -----------------
    h_prev = h_sc[...].astype(jnp.bfloat16)                             # (1, H)
    gates = (jnp.dot(x, w_ih_t, preferred_element_type=jnp.float32)
             + jnp.dot(h_prev, w_hh_t, preferred_element_type=jnp.float32)
             + b_g)                                                     # (1, 4H) f32

    # One full-width sigmoid (single EUP pass); tanh(g) recovered on the VPU via
    # tanh(x) = 2*sigmoid(2x) - 1 (the 2x is baked into the g-gate weights/bias).
    sig = jax.nn.sigmoid(gates)
    i_g = sig[:, 0 * H:1 * H]
    f_g = sig[:, 1 * H:2 * H]
    g_g = 2.0 * sig[:, 2 * H:3 * H] - 1.0
    o_g = sig[:, 3 * H:4 * H]

    c = f_g * c_sc[...] + i_g * g_g
    h = o_g * jnp.tanh(c)
    c_sc[...] = c
    h_sc[...] = h

    # fc: logits = h @ W_fc^T + b_fc  (lane-dense Vp-wide store; sliced to V outside)
    out_ref[0] = (jnp.dot(h.astype(jnp.bfloat16), w_fc_t,
                          preferred_element_type=jnp.float32) + b_o)


# =====================================================================
# One-time host-side parameter packing (review #1 / #2 / #3 / #8)
# =====================================================================
def prepare_params(emb_table, w_ih, b_ih, w_hh, b_hh, w_fc, b_fc):
    V, E = emb_table.shape
    H4 = w_ih.shape[0]
    H = H4 // 4
    Vp = _round_up(V, _LANE)
    L = _round_up(max(H4, Vp), _LANE)

    bg_row = E + 2 * H          # gate-bias row (even-aligned for bf16 sublane packing)
    bf_row = bg_row + 2         # fc-bias row  (even-aligned)
    R = _round_up(bf_row + 1, _SUBLANE)

    # Pre-scale g-gate columns by 2 so the kernel can use the sigmoid identity.
    scale = jnp.ones((H4,), jnp.float32).at[2 * H:3 * H].set(2.0)

    w_ih_t = jnp.asarray(w_ih, jnp.float32).T * scale        # (E, 4H)
    w_hh_t = jnp.asarray(w_hh, jnp.float32).T * scale        # (H, 4H)
    w_fc_t = jnp.asarray(w_fc, jnp.float32).T                # (H, V)
    b_gate = (jnp.asarray(b_ih, jnp.float32)
              + jnp.asarray(b_hh, jnp.float32)) * scale      # (4H,)
    b_out = jnp.asarray(b_fc, jnp.float32)                   # (V,)

    packed = jnp.zeros((R, L), jnp.float32)
    packed = packed.at[0:E, 0:H4].set(w_ih_t)
    packed = packed.at[E:E + H, 0:H4].set(w_hh_t)
    packed = packed.at[E + H:E + 2 * H, 0:V].set(w_fc_t)     # cols V..Vp stay zero
    packed = packed.at[bg_row, 0:H4].set(b_gate)
    packed = packed.at[bf_row, 0:V].set(b_out)               # lanes V..Vp stay zero
    # bf16 cast: the x2 pre-scaling and the zero padding are exact in bf16.
    packed = packed.astype(jnp.bfloat16)

    return {
        "emb": jnp.asarray(emb_table, jnp.float32),   # f32: keeps the dynamic row
                                                      # select off packed-sublane layout
        "packed": packed,
        "dims": (V, E, H, Vp, bg_row, bf_row),
    }


# =====================================================================
# Wrappers
# =====================================================================
def lstm_forward(token_ids, params):
    """Embed -> LSTM -> fc over a token sequence; returns (T, V) per-step logits.

    The original PyTorch module's forward is exactly the T == 1 case.
    """
    V, E, H, Vp, bg_row, bf_row = params["dims"]
    emb = params["emb"]
    packed = params["packed"]
    T = int(token_ids.shape[0])
    R, L = packed.shape

    kernel = functools.partial(_lstm_seq_kernel, E=E, H=H,
                               bg_row=bg_row, bf_row=bf_row)

    grid_spec = pltpu.PrefetchScalarGridSpec(
        num_scalar_prefetch=1,           # token ids -> SMEM before the grid runs
        grid=(T,),
        in_specs=[
            # Whole embedding table resident in VMEM, DMA'd once per call.
            pl.BlockSpec((emb.shape[0], E), lambda t, toks: (0, 0)),
            # Single packed weights+biases block, DMA'd once per call.
            pl.BlockSpec((R, L), lambda t, toks: (0, 0)),
        ],
        # 3-D output so the block's last two dims equal the array's (lane-dense).
        out_specs=pl.BlockSpec((1, 1, Vp), lambda t, toks: (t, 0, 0)),
        scratch_shapes=[
            pltpu.VMEM((1, H), jnp.float32),   # h carried across grid steps
            pltpu.VMEM((1, H), jnp.float32),   # c carried across grid steps
        ],
    )

    out_padded = pl.pallas_call(
        kernel,
        out_shape=jax.ShapeDtypeStruct((T, 1, Vp), jnp.float32),
        grid_spec=grid_spec,
        compiler_params=pltpu.CompilerParams(
            # Time axis carries the h/c recurrence -> must stay "arbitrary".
            dimension_semantics=("arbitrary",)),
    )(token_ids, emb, packed)

    return out_padded.reshape(T, Vp)[:, :V]


def lstm_module_forward(x, params):
    """Pallas equivalent of LSTM.forward(x): single token index -> (1, vocab)."""
    return lstm_forward(jnp.atleast_1d(x).astype(jnp.int32), params)


# =====================================================================
# Pure-JAX reference (mirrors PyTorch math; optionally mirrors bf16 storage)
# =====================================================================
def _reference_forward(token_ids, emb_table, w_ih, b_ih, w_hh, b_hh, w_fc, b_fc,
                       mirror_bf16=True):
    def rnd(a):
        return a.astype(jnp.bfloat16).astype(jnp.float32) if mirror_bf16 else a

    H = w_hh.shape[1]
    wi, wh, wf = rnd(w_ih), rnd(w_hh), rnd(w_fc)
    bg = rnd(b_ih + b_hh)
    bo = rnd(b_fc)
    h = jnp.zeros((1, H), jnp.float32)
    c = jnp.zeros((1, H), jnp.float32)
    outs = []
    for t in range(int(token_ids.shape[0])):
        x = rnd(emb_table[token_ids[t]].reshape(1, -1))
        gates = x @ wi.T + rnd(h) @ wh.T + bg
        i_g = jax.nn.sigmoid(gates[:, 0 * H:1 * H])
        f_g = jax.nn.sigmoid(gates[:, 1 * H:2 * H])
        g_g = jnp.tanh(gates[:, 2 * H:3 * H])
        o_g = jax.nn.sigmoid(gates[:, 3 * H:4 * H])
        c = f_g * c + i_g * g_g
        h = o_g * jnp.tanh(c)
        outs.append(rnd(h) @ wf.T + bo)
    return jnp.concatenate(outs, axis=0)


if __name__ == "__main__":
    key = jax.random.PRNGKey(0)
    k_emb, k_wih, k_bih, k_whh, k_bhh, k_wfc, k_bfc, k_tok = jax.random.split(key, 8)

    emb_table = jax.random.normal(k_emb, (VOCAB_SIZE, EMBED_DIM), jnp.float32) * 0.1
    w_ih = jax.random.normal(k_wih, (4 * HIDDEN_DIM, EMBED_DIM), jnp.float32) * 0.1
    b_ih = jax.random.normal(k_bih, (4 * HIDDEN_DIM,), jnp.float32) * 0.1
    w_hh = jax.random.normal(k_whh, (4 * HIDDEN_DIM, HIDDEN_DIM), jnp.float32) * 0.1
    b_hh = jax.random.normal(k_bhh, (4 * HIDDEN_DIM,), jnp.float32) * 0.1
    w_fc = jax.random.normal(k_wfc, (VOCAB_SIZE, HIDDEN_DIM), jnp.float32) * 0.1
    b_fc = jax.random.normal(k_bfc, (VOCAB_SIZE,), jnp.float32) * 0.1

    # One-time packing; per call only the token ids vary.
    params = prepare_params(emb_table, w_ih, b_ih, w_hh, b_hh, w_fc, b_fc)

    # --- 1) single-token forward: exact semantics of the PyTorch module -------
    token_id = jax.random.randint(k_tok, (1,), 0, VOCAB_SIZE, dtype=jnp.int32)
    out1 = jax.block_until_ready(lstm_module_forward(token_id, params))
    ref1_tight = _reference_forward(token_id, emb_table, w_ih, b_ih, w_hh, b_hh,
                                    w_fc, b_fc, mirror_bf16=True)
    ref1_exact = _reference_forward(token_id, emb_table, w_ih, b_ih, w_hh, b_hh,
                                    w_fc, b_fc, mirror_bf16=False)
    assert out1.shape == (1, VOCAB_SIZE)
    assert jnp.allclose(out1, ref1_tight, atol=1e-4, rtol=1e-4), "mismatch vs bf16 reference"
    assert jnp.allclose(out1, ref1_exact, atol=5e-3, rtol=5e-3), "mismatch vs f32 module reference"

    # --- 2) multi-token decode: weights/table resident across the time grid ---
    seq = jax.random.randint(jax.random.PRNGKey(1), (8,), 0, VOCAB_SIZE, dtype=jnp.int32)
    out8 = jax.block_until_ready(lstm_forward(seq, params))
    ref8 = _reference_forward(seq, emb_table, w_ih, b_ih, w_hh, b_hh, w_fc, b_fc,
                              mirror_bf16=True)
    assert out8.shape == (8, VOCAB_SIZE)
    assert jnp.allclose(out8, ref8, atol=1e-4, rtol=1e-4), "sequence mismatch vs reference"

    print("KERNEL_OK")
</pallas_src>

<mosaic_0001>
module attributes {stable_mosaic.version = 11 : i64} {
  func.func @_lstm_seq_kernel(%arg0: i32, %arg1: memref<1xi32, #tpu.memory_space<smem>>, %arg2: memref<64x32xf32, #tpu.memory_space<vmem>>, %arg3: memref<104x128xbf16, #tpu.memory_space<vmem>>, %arg4: memref<1x1x128xf32, #tpu.memory_space<vmem>>, %arg5: memref<1x32xf32, #tpu.memory_space<vmem>>, %arg6: memref<1x32xf32, #tpu.memory_space<vmem>>) attributes {dimension_semantics = [#tpu.dimension_semantics<arbitrary>], iteration_bounds = array<i64: 1>, scalar_prefetch = 1 : i64, scratch_operands = 2 : i64, tpu.core_type = #tpu.core_type<tc>, window_params = [{pipeline_mode = #tpu.pipeline_mode<synchronous>, transform_indices = @transform_0, window_bounds = array<i64: 64, 32>}, {pipeline_mode = #tpu.pipeline_mode<synchronous>, transform_indices = @transform_1, window_bounds = array<i64: 104, 128>}, {transform_indices = @transform_2, window_bounds = array<i64: 1, 1, 128>}]} {
    %c0_i32 = arith.constant 0 : i32
    %0 = arith.cmpi eq, %arg0, %c0_i32 : i32
    %1 = arith.extui %0 : i1 to i32
    %c0_i32_0 = arith.constant 0 : i32
    %2 = arith.cmpi ne, %1, %c0_i32_0 : i32
    scf.if %2 {
      %cst_23 = arith.constant 0.000000e+00 : f32
      %48 = vector.broadcast %cst_23 : f32 to vector<1x32xf32>
      %c0_24 = arith.constant 0 : index
      %c0_25 = arith.constant 0 : index
      %49 = vector.load %arg5[%c0_24, %c0_25] : memref<1x32xf32, #tpu.memory_space<vmem>>, vector<1x32xf32>
      tpu.vector_store %arg5[%c0_24, %c0_25], %48 {strides = array<i32>} : memref<1x32xf32, #tpu.memory_space<vmem>>, vector<1x32xf32>,
      %cst_26 = arith.constant 0.000000e+00 : f32
      %50 = vector.broadcast %cst_26 : f32 to vector<1x32xf32>
      %c0_27 = arith.constant 0 : index
      %c0_28 = arith.constant 0 : index
      %51 = vector.load %arg6[%c0_27, %c0_28] : memref<1x32xf32, #tpu.memory_space<vmem>>, vector<1x32xf32>
      tpu.vector_store %arg6[%c0_27, %c0_28], %50 {strides = array<i32>} : memref<1x32xf32, #tpu.memory_space<vmem>>, vector<1x32xf32>,
    } else {
    }
    %3 = arith.index_cast %arg0 : i32 to index
    %4 = memref.load %arg1[%3] : memref<1xi32, #tpu.memory_space<smem>>
    %5 = arith.index_cast %4 : i32 to index
    %c0 = arith.constant 0 : index
    %6 = vector.load %arg2[%5, %c0] : memref<64x32xf32, #tpu.memory_space<vmem>>, vector<1x32xf32>
    %7 = arith.truncf %6 : vector<1x32xf32> to vector<1x32xbf16>
    %c0_1 = arith.constant 0 : index
    %c0_2 = arith.constant 0 : index
    %8 = vector.load %arg3[%c0_1, %c0_2] : memref<104x128xbf16, #tpu.memory_space<vmem>>, vector<32x128xbf16>
    %c32 = arith.constant 32 : index
    %c0_3 = arith.constant 0 : index
    %9 = vector.load %arg3[%c32, %c0_3] : memref<104x128xbf16, #tpu.memory_space<vmem>>, vector<32x128xbf16>
    %c64 = arith.constant 64 : index
    %c0_4 = arith.constant 0 : index
    %10 = vector.load %arg3[%c64, %c0_4] : memref<104x128xbf16, #tpu.memory_space<vmem>>, vector<32x128xbf16>
    %c96 = arith.constant 96 : index
    %c0_5 = arith.constant 0 : index
    %11 = vector.load %arg3[%c96, %c0_5] : memref<104x128xbf16, #tpu.memory_space<vmem>>, vector<1x128xbf16>
    %12 = arith.extf %11 : vector<1x128xbf16> to vector<1x128xf32>
    %c98 = arith.constant 98 : index
    %c0_6 = arith.constant 0 : index
    %13 = vector.load %arg3[%c98, %c0_6] : memref<104x128xbf16, #tpu.memory_space<vmem>>, vector<1x128xbf16>
    %14 = arith.extf %13 : vector<1x128xbf16> to vector<1x128xf32>
    %c0_7 = arith.constant 0 : index
    %c0_8 = arith.constant 0 : index
    %15 = vector.load %arg5[%c0_7, %c0_8] : memref<1x32xf32, #tpu.memory_space<vmem>>, vector<1x32xf32>
    %16 = arith.truncf %15 : vector<1x32xf32> to vector<1x32xbf16>
    %cst = arith.constant dense<0.000000e+00> : vector<1x128xf32>
    %17 = tpu.matmul %7, %8, %cst {dimension_numbers = #tpu.dot_dimension_numbers<[1], [0], [0], [1], [0, 0, 1, 1], [], []>} : vector<1x32xbf16>, vector<32x128xbf16>, vector<1x128xf32> -> vector<1x128xf32>
    %cst_9 = arith.constant dense<0.000000e+00> : vector<1x128xf32>
    %18 = tpu.matmul %16, %9, %cst_9 {dimension_numbers = #tpu.dot_dimension_numbers<[1], [0], [0], [1], [0, 0, 1, 1], [], []>} : vector<1x32xbf16>, vector<32x128xbf16>, vector<1x128xf32> -> vector<1x128xf32>
    %19 = arith.addf %17, %18 : vector<1x128xf32>
    %20 = arith.addf %19, %12 : vector<1x128xf32>
    %21 = arith.negf %20 : vector<1x128xf32>
    %22 = math.exp %21 : vector<1x128xf32>
    %cst_10 = arith.constant 1.000000e+00 : f32
    %23 = vector.broadcast %cst_10 : f32 to vector<1x128xf32>
    %24 = arith.addf %23, %22 : vector<1x128xf32>
    %25 = arith.divf %23, %24 : vector<1x128xf32>
    %26 = vector.extract_strided_slice %25 {offsets = [0, 0], sizes = [1, 32], strides = [1, 1]} : vector<1x128xf32> to vector<1x32xf32>
    %27 = vector.extract_strided_slice %25 {offsets = [0, 32], sizes = [1, 32], strides = [1, 1]} : vector<1x128xf32> to vector<1x32xf32>
    %28 = vector.extract_strided_slice %25 {offsets = [0, 64], sizes = [1, 32], strides = [1, 1]} : vector<1x128xf32> to vector<1x32xf32>
    %cst_11 = arith.constant 2.000000e+00 : f32
    %29 = vector.broadcast %cst_11 : f32 to vector<1x32xf32>
    %30 = arith.mulf %29, %28 : vector<1x32xf32>
    %cst_12 = arith.constant 1.000000e+00 : f32
    %31 = vector.broadcast %cst_12 : f32 to vector<1x32xf32>
    %32 = arith.subf %30, %31 : vector<1x32xf32>
    %33 = vector.extract_strided_slice %25 {offsets = [0, 96], sizes = [1, 32], strides = [1, 1]} : vector<1x128xf32> to vector<1x32xf32>
    %c0_13 = arith.constant 0 : index
    %c0_14 = arith.constant 0 : index
    %34 = vector.load %arg6[%c0_13, %c0_14] : memref<1x32xf32, #tpu.memory_space<vmem>>, vector<1x32xf32>
    %35 = arith.mulf %27, %34 : vector<1x32xf32>
    %36 = arith.mulf %26, %32 : vector<1x32xf32>
    %37 = arith.addf %35, %36 : vector<1x32xf32>
    %38 = math.tanh %37 : vector<1x32xf32>
    %39 = arith.mulf %33, %38 : vector<1x32xf32>
    %c0_15 = arith.constant 0 : index
    %c0_16 = arith.constant 0 : index
    %40 = vector.load %arg6[%c0_15, %c0_16] : memref<1x32xf32, #tpu.memory_space<vmem>>, vector<1x32xf32>
    tpu.vector_store %arg6[%c0_15, %c0_16], %37 {strides = array<i32>} : memref<1x32xf32, #tpu.memory_space<vmem>>, vector<1x32xf32>,
    %c0_17 = arith.constant 0 : index
    %c0_18 = arith.constant 0 : index
    %41 = vector.load %arg5[%c0_17, %c0_18] : memref<1x32xf32, #tpu.memory_space<vmem>>, vector<1x32xf32>
    tpu.vector_store %arg5[%c0_17, %c0_18], %39 {strides = array<i32>} : memref<1x32xf32, #tpu.memory_space<vmem>>, vector<1x32xf32>,
    %42 = arith.truncf %39 : vector<1x32xf32> to vector<1x32xbf16>
    %cst_19 = arith.constant dense<0.000000e+00> : vector<1x128xf32>
    %43 = tpu.matmul %42, %10, %cst_19 {dimension_numbers = #tpu.dot_dimension_numbers<[1], [0], [0], [1], [0, 0, 1, 1], [], []>} : vector<1x32xbf16>, vector<32x128xbf16>, vector<1x128xf32> -> vector<1x128xf32>
    %44 = arith.addf %43, %14 : vector<1x128xf32>
    %c0_20 = arith.constant 0 : index
    %c0_21 = arith.constant 0 : index
    %c0_22 = arith.constant 0 : index
    %45 = vector.load %arg4[%c0_20, %c0_21, %c0_22] : memref<1x1x128xf32, #tpu.memory_space<vmem>>, vector<1x1x128xf32>
    %46 = vector.shape_cast %45 : vector<1x1x128xf32> to vector<1x128xf32>
    %47 = vector.shape_cast %44 : vector<1x128xf32> to vector<1x1x128xf32>
    tpu.vector_store %arg4[%c0_20, %c0_21, %c0_22], %47 {strides = array<i32>} : memref<1x1x128xf32, #tpu.memory_space<vmem>>, vector<1x1x128xf32>,
    return
  }
  func.func @transform_0(%arg0: i32, %arg1: memref<1xi32, #tpu.memory_space<smem>>) -> (i32, i32) {
    %c0_i32 = arith.constant 0 : i32
    %c0_i32_0 = arith.constant 0 : i32
    %c0_i32_1 = arith.constant 0 : i32
    return %c0_i32, %c0_i32_0 : i32, i32
  }
  func.func @transform_1(%arg0: i32, %arg1: memref<1xi32, #tpu.memory_space<smem>>) -> (i32, i32) {
    %c0_i32 = arith.constant 0 : i32
    %c0_i32_0 = arith.constant 0 : i32
    %c0_i32_1 = arith.constant 0 : i32
    return %c0_i32, %c0_i32_0 : i32, i32
  }
  func.func @transform_2(%arg0: i32, %arg1: memref<1xi32, #tpu.memory_space<smem>>) -> (i32, i32, i32) {
    %c0_i32 = arith.constant 0 : i32
    %c0_i32_0 = arith.constant 0 : i32
    %c0_i32_1 = arith.constant 0 : i32
    return %arg0, %c0_i32, %c0_i32_0 : i32, i32, i32
  }
}

</mosaic_0001>

<llo_original>
// kernel: tpu_custom_call.1
$region0: #{tpu_custom_call.1}
  #allocation0 [shape = 'u32[]', space=smem, size = 0x4, offset = 0x4, fixed_abs, tag = 'smem constant byte address 0x4 - core index']
  #allocation1 [shape = 'u32[144,128]{1,0:T(1,128)}', space=vmem, size = 0x12000, scoped, tag = 'internal scratch']
  #allocation2 [shape = 'f32[1,32]{1,0:T(1,128)}', space=vmem, size = 0x200, scoped, tag = 'scratch operand']
  #allocation3 [shape = 'f32[1,32]{1,0:T(1,128)}', space=vmem, size = 0x200, scoped, tag = 'scratch operand']
  #allocation4 [shape = 's32[1]{0}', space=sflag, size = 0x4, scoped, tag = 'scoped memory for tpu_custom_call.1']
  #allocation5 [shape = 's32[1]{0:T(128)S(6)}', space=smem, size = 0x200, scoped, tag = 'prefetched SMEM operand 0']
  %s0 = inlined_call_operand.<no memory space> [shape: s32[1], index: 0, kind: input, shape index: {}]
  %s1 = inlined_call_operand.vmem [shape: f32[64,32], index: 1, kind: input, shape index: {}]
  %s2 = inlined_call_operand.vmem [shape: bf16[104,128], index: 2, kind: input, shape index: {}]
  %s3 = inlined_call_operand.hbm [shape: f32[1,1,128], index: 3, kind: output, shape index: {}]
  %s4 = sld [smem:[#allocation0]]
  $region22: #{tpu_custom_call.1} parent=0
    _
  %s6 = ssub.s32 1, %s4
  %s7 = scalar_select 0, %s6, %s4
  %8 = sst [smem:[#allocation5]] %s0
  $region1: #{tpu_custom_call.1} parent=0
    #allocation6 [shape = 'u8[512]{0}', space=vmem, size = 0x400, scoped, tag = 'output window, operand 0, single buffered']
    #allocation7 [shape = 's32[1]{0}', space=sflag, size = 0x4, scoped, tag = 'scoped memory for tpu_custom_call.1']
    %9 = vsyncpa [#allocation7], 0
    // Predicated region
    $region2: #{tpu_custom_call.1} parent=1 // pred_check
      _
    $region3: #{tpu_custom_call.1} parent=1 // pred_check_branch
      %11 = sbr.rel (0) target = $region5
    $region4: #{tpu_custom_call.1} parent=1 // pred_region
      _
    $region5: #{tpu_custom_call.1} parent=1 // pred_fallthru
      _
    // Predicated region
    $region6: #{tpu_custom_call.1} parent=1 // pred_check
      _
    $region7: #{tpu_custom_call.1} parent=1 // pred_check_branch
      %13 = sbr.rel (0) target = $region9
    $region8: #{tpu_custom_call.1} parent=1 // pred_region
      _
    $region9: #{tpu_custom_call.1} parent=1 // pred_fallthru
      _
    %p15 = scmp.eq.s32.totalorder 0, 0
    // Predicated region
    $region10: #{tpu_custom_call.1} parent=1 // pred_check
      %p16 = pneg %p15
    $region11: #{tpu_custom_call.1} parent=1 // pred_check_branch
      %18 = sbr.rel (%p16) target = $region13
    $region12: #{tpu_custom_call.1} parent=1 // pred_region
      %vm19 = vcmask 253952
      %20 = vst.msk [vmem:[#allocation2] sm:$0x1] %vm19, 0.0
      %21 = vst.msk [vmem:[#allocation3] sm:$0x1] %vm19, 0.0
    $region13: #{tpu_custom_call.1} parent=1 // pred_fallthru
      _
    %s22 = sld [smem:[#allocation5]]
    %s23 = scalar_lea.vmem %s1, %s22
    %v24 = vld [vmem:[%s23] sm:$0x1]
    %v25 = vpack.c.bf16 %v24, %v24
    %v26 = vld [vmem:[%s2] sm:$0xf]
    %v27 = vld [vmem:[%s2 + $0x4] sm:$0xf]
    %v28 = vld [vmem:[%s2 + $0x8] sm:$0xf]
    %v29 = vld [vmem:[%s2 + $0xc] sm:$0xf]
    %v30 = vld [vmem:[%s2 + $0x10] sm:$0xf]
    %v31 = vld [vmem:[%s2 + $0x14] sm:$0xf]
    %v32 = vld [vmem:[%s2 + $0x18] sm:$0xf]
    %v33 = vld [vmem:[%s2 + $0x1c] sm:$0xf]
    %v34 = vld [vmem:[%s2 + $0x20] sm:$0xf]
    %v35 = vld [vmem:[%s2 + $0x24] sm:$0xf]
    %v36 = vld [vmem:[%s2 + $0x28] sm:$0xf]
    %v37 = vld [vmem:[%s2 + $0x2c] sm:$0xf]
    %v38 = vld [vmem:[%s2 + $0x30] sm:$0x1]
    %v39 = vunpack.c.l.bf16 %v38
    %v40 = vld [vmem:[%s2 + $0x30] sm:$0x2]
    %v41 = vunpack.c.l.bf16 %v40
    %v42 = vld [vmem:[#allocation2] sm:$0x1]
    %v43 = vpack.c.bf16 %v42, %v42
    %v48 = vunpack.c.l.b16 %v30
    %v49 = vunpack.c.l.b16 %v31
    %v50 = vunpack.c.l.b16 %v32
    %v51 = vunpack.c.l.b16 %v33
    %v52 = vpack.c.b16 %v49, %v48
    %v53 = vpack.c.b16 %v51, %v50
    %vm56 = vcmask 261120
    %v58 = vsel %vm56, %v43, 0
    %60 = vmatprep.subr.bf16.mxu0 0
    %61 = vmatpush1.bf16.msra.mxu0 0
    %62 = vmatprep.subr.bf16.mxu0 0
    %63 = vmatpush1.bf16.msra.mxu0 0
    %64 = vmatprep.subr.bf16.mxu0 0
    %65 = vmatpush1.bf16.msra.mxu0 0
    %66 = vmatprep.subr.bf16.mxu0 0
    %67 = vmatpush1.bf16.msra.mxu0 0
    %68 = vmatprep.subr.bf16.mxu0 0
    %69 = vmatpush1.bf16.msra.mxu0 0
    %70 = vmatprep.subr.bf16.mxu0 0
    %71 = vmatpush1.bf16.msra.mxu0 0
    %72 = vmatprep.subr.bf16.mxu0 0
    %73 = vmatpush1.bf16.msra.mxu0 %v53
    %74 = vmatprep.subr.bf16.mxu0 0
    %75 = vmatpush1.bf16.msra.mxu0 %v52
    %76 = vmatprep.subr.bf16.mxu0 0
    %77 = vmatpush2.bf16.msra.mxu0 0
    %78 = vmatprep.subr.bf16.mxu0 0
    %79 = vmatpush2.bf16.msra.mxu0 0
    %80 = vmatprep.subr.bf16.mxu0 0
    %81 = vmatpush2.bf16.msra.mxu0 0
    %82 = vmatprep.subr.bf16.mxu0 0
    %83 = vmatpush2.bf16.msra.mxu0 0
    %84 = vmatprep.subr.bf16.mxu0 0
    %85 = vmatpush2.bf16.msra.mxu0 0
    %86 = vmatprep.subr.bf16.mxu0 0
    %87 = vmatpush2.bf16.msra.mxu0 0
    %88 = vmatprep.subr.bf16.mxu0 0
    %89 = vmatpush2.bf16.msra.mxu0 0
    %90 = vmatprep.subr.bf16.mxu0 0
    %91 = vmatpush2.bf16.msra.mxu0 0
    %92 = vmatprep.mubr.bf16.mxu0 0
    %93 = vmatmul.mubr.bf16.gmra.mxu0 %v58
    %v94 = vpop.f32.mrf.mxu0
    %v95 = vadd.f32 0.0, %v94
    %v96 = vpop.f32.mrf.mxu0
    %v97 = vpop.f32.mrf.mxu0
    %v98 = vpop.f32.mrf.mxu0
    %99 = vdwg.mxu0
    %v104 = vunpack.c.l.b16 %v26
    %v105 = vunpack.c.l.b16 %v27
    %v106 = vunpack.c.l.b16 %v28
    %v107 = vunpack.c.l.b16 %v29
    %v108 = vpack.c.b16 %v105, %v104
    %v109 = vpack.c.b16 %v107, %v106
    %v113 = vsel %vm56, %v25, 0
    %115 = vmatprep.subr.bf16.mxu0 0
    %116 = vmatpush1.bf16.msra.mxu0 0
    %117 = vmatprep.subr.bf16.mxu0 0
    %118 = vmatpush1.bf16.msra.mxu0 0
    %119 = vmatprep.subr.bf16.mxu0 0
    %120 = vmatpush1.bf16.msra.mxu0 0
    %121 = vmatprep.subr.bf16.mxu0 0
    %122 = vmatpush1.bf16.msra.mxu0 0
    %123 = vmatprep.subr.bf16.mxu0 0
    %124 = vmatpush1.bf16.msra.mxu0 0
    %125 = vmatprep.subr.bf16.mxu0 0
    %126 = vmatpush1.bf16.msra.mxu0 0
    %127 = vmatprep.subr.bf16.mxu0 0
    %128 = vmatpush1.bf16.msra.mxu0 %v109
    %129 = vmatprep.subr.bf16.mxu0 0
    %130 = vmatpush1.bf16.msra.mxu0 %v108
    %131 = vmatprep.subr.bf16.mxu0 0
    %132 = vmatpush2.bf16.msra.mxu0 0
    %133 = vmatprep.subr.bf16.mxu0 0
    %134 = vmatpush2.bf16.msra.mxu0 0
    %135 = vmatprep.subr.bf16.mxu0 0
    %136 = vmatpush2.bf16.msra.mxu0 0
    %137 = vmatprep.subr.bf16.mxu0 0
    %138 = vmatpush2.bf16.msra.mxu0 0
    %139 = vmatprep.subr.bf16.mxu0 0
    %140 = vmatpush2.bf16.msra.mxu0 0
    %141 = vmatprep.subr.bf16.mxu0 0
    %142 = vmatpush2.bf16.msra.mxu0 0
    %143 = vmatprep.subr.bf16.mxu0 0
    %144 = vmatpush2.bf16.msra.mxu0 0
    %145 = vmatprep.subr.bf16.mxu0 0
    %146 = vmatpush2.bf16.msra.mxu0 0
    %147 = vmatprep.mubr.bf16.mxu0 0
    %148 = vmatmul.mubr.bf16.gmra.mxu0 %v113
    %v149 = vpop.f32.mrf.mxu0
    %v150 = vadd.f32 %v95, %v149
    %v151 = vpop.f32.mrf.mxu0
    %v152 = vpop.f32.mrf.mxu0
    %v153 = vpop.f32.mrf.mxu0
    %154 = vdwg.mxu0
    %v155 = vadd.f32 %v150, %v39
    %v156 = vxor.u32 %v155, 2147483648
    %v157 = vmul.f32 %v156, 1.442695
    %v158 = vpow.pop %v157
    %v159 = vadd.f32 %v158, 1.0
    %v160 = vrcp.pop %v159
    %v161 = vmul.f32 1.0, %v160
    %v162 = vmul.f32 %v161, 2.0
    %v163 = vsub.f32 %v162, 1.0
    %v164 = vld [vmem:[#allocation3] sm:$0x1]
    %v166 = vlaneseq
    %v167 = vshrl.u32 %v166, 7
    %v168 = vsub.s32 0, %v167
    %v169 = vrot.slane %v164, %v168
    %170 = vrot.lane.b32.xlu0 %v169, 32
    %v171 = vpop.permute.xlu0 %170
    %v173 = vmul.f32 %v161, %v171
    %175 = vrot.lane.b32.xlu0 %v163, 64
    %v176 = vpop.permute.xlu0 %175
    %v178 = vmul.f32 %v161, %v176
    %180 = vrot.lane.b32.xlu0 %v178, 32
    %v181 = vpop.permute.xlu0 %180
    %v183 = vadd.f32 %v173, %v181
    %v184 = vtanh.pop %v183
    %186 = vrot.lane.b32.xlu0 %v184, 64
    %v187 = vpop.permute.xlu0 %186
    %v189 = vmul.f32 %v161, %v187
    %191 = vrot.lane.b32.xlu0 %v183, 96
    %v192 = vpop.permute.xlu0 %191
    %vm194 = vcmask 253952
    %195 = vst.msk [vmem:[#allocation3] sm:$0x1] %vm194, %v192
    %197 = vrot.lane.b32.xlu0 %v189, 32
    %v198 = vpop.permute.xlu0 %197
    %200 = vst.msk [vmem:[#allocation2] sm:$0x1] %vm194, %v198
    %v201 = vpack.c.bf16 %v189, %v189
    %203 = vrot.lane.b32.xlu0 %v201, 32
    %v204 = vpop.permute.xlu0 %203
    %v209 = vunpack.c.l.b16 %v34
    %v210 = vunpack.c.l.b16 %v35
    %v211 = vunpack.c.l.b16 %v36
    %v212 = vunpack.c.l.b16 %v37
    %v213 = vpack.c.b16 %v210, %v209
    %v214 = vpack.c.b16 %v212, %v211
    %v218 = vrot.slane %v41, 2
    %v221 = vsel %vm56, %v204, 0
    %223 = vmatprep.subr.bf16.mxu0 0
    %224 = vmatpush1.bf16.msra.mxu0 0
    %225 = vmatprep.subr.bf16.mxu0 0
    %226 = vmatpush1.bf16.msra.mxu0 0
    %227 = vmatprep.subr.bf16.mxu0 0
    %228 = vmatpush1.bf16.msra.mxu0 0
    %229 = vmatprep.subr.bf16.mxu0 0
    %230 = vmatpush1.bf16.msra.mxu0 0
    %231 = vmatprep.subr.bf16.mxu0 0
    %232 = vmatpush1.bf16.msra.mxu0 0
    %233 = vmatprep.subr.bf16.mxu0 0
    %234 = vmatpush1.bf16.msra.mxu0 0
    %235 = vmatprep.subr.bf16.mxu0 0
    %236 = vmatpush1.bf16.msra.mxu0 %v214
    %237 = vmatprep.subr.bf16.mxu0 0
    %238 = vmatpush1.bf16.msra.mxu0 %v213
    %239 = vmatprep.subr.bf16.mxu0 0
    %240 = vmatpush2.bf16.msra.mxu0 0
    %241 = vmatprep.subr.bf16.mxu0 0
    %242 = vmatpush2.bf16.msra.mxu0 0
    %243 = vmatprep.subr.bf16.mxu0 0
    %244 = vmatpush2.bf16.msra.mxu0 0
    %245 = vmatprep.subr.bf16.mxu0 0
    %246 = vmatpush2.bf16.msra.mxu0 0
    %247 = vmatprep.subr.bf16.mxu0 0
    %248 = vmatpush2.bf16.msra.mxu0 0
    %249 = vmatprep.subr.bf16.mxu0 0
    %250 = vmatpush2.bf16.msra.mxu0 0
    %251 = vmatprep.subr.bf16.mxu0 0
    %252 = vmatpush2.bf16.msra.mxu0 0
    %253 = vmatprep.subr.bf16.mxu0 0
    %254 = vmatpush2.bf16.msra.mxu0 0
    %255 = vmatprep.mubr.bf16.mxu0 0
    %256 = vmatmul.mubr.bf16.gmra.mxu0 %v221
    %v257 = vpop.f32.mrf.mxu0
    %v258 = vadd.f32 %v218, %v257
    %v259 = vpop.f32.mrf.mxu0
    %v260 = vpop.f32.mrf.mxu0
    %v261 = vpop.f32.mrf.mxu0
    %262 = vdwg.mxu0
    %263 = vst [vmem:[#allocation6] sm:$0x1] %v258
    // Predicated region
    $region14: #{tpu_custom_call.1} parent=1 // pred_check
      _
    $region15: #{tpu_custom_call.1} parent=1 // pred_check_branch
      %265 = sbr.rel (0) target = $region17
    $region16: #{tpu_custom_call.1} parent=1 // pred_region
      %s267 = ssub.s32 16, 16
      %268 = vsyncadd [#allocation7], %s267
      %s270 = sshll.u32 [#allocation6], 4
      %s271 = int_to_ptr.vmem [resolvable:$true] %s270
      %273 = dma.vmem_to_hbm [thread:$0]  %s271, 16, %s3, [#allocation7]
    $region17: #{tpu_custom_call.1} parent=1 // pred_fallthru
      _
    // Predicated region
    $region18: #{tpu_custom_call.1} parent=1 // pred_check
      _
    $region19: #{tpu_custom_call.1} parent=1 // pred_check_branch
      %275 = sbr.rel (0) target = $region21
    $region20: #{tpu_custom_call.1} parent=1 // pred_region
      %276 = dma.done [#allocation7], 16
    $region21: #{tpu_custom_call.1} parent=1 // pred_fallthru
      _
    %277 = vsyncpa [#allocation7], 1

</llo_original>
